<compile_context>
chip_gen: v7x
topology: tpu7x:2x2x1
jax: 0.10.0
libtpu: 0.0.40
codegen_flags: <defaults>
</compile_context>

<pallas_src>
import math

import jax
import jax.numpy as jnp
from jax import lax
from jax.experimental import pallas as pl
from jax.experimental.pallas import tpu as pltpu

_MASK_NEG = -1e30                      # Python float: exp(-1e30 - m) -> exactly 0
_VMEM_BUDGET = 40 * 1024 * 1024        # conservative: fits v7x's 64 MiB physical VMEM


# ----------------------------------------------------------------------------
# Kernel body
# ----------------------------------------------------------------------------
def _sdpa_body(q_ref, k_ref, v_ref, o_ref, w_ref, mask_ref, scale):
    # q_ref: (tq, D)   k_ref/v_ref: (S, D)   o_ref: (tq, D)
    # w_ref: (tq, S) or None   mask_ref: (tq or 1, S) int8 or None
    # scores = q @ k^T : contract head_dim of both operands directly
    # (no explicit .T -> no XLU transpose / VMEM copy of the (S, D) K tile).
    scores = lax.dot_general(
        q_ref[...], k_ref[...],
        dimension_numbers=(((1,), (1,)), ((), ())),
        preferred_element_type=jnp.float32)
    # Apply 1/sqrt(d_k) on the f32 scores (free VPU muls when mem-bound, and no
    # extra low-precision rounding of q for bf16/fp16 inputs).
    scores = scores * scale

    if mask_ref is not None:
        # int8 mask (possibly (1, S) -> broadcasts against (tq, S) scores).
        scores = jnp.where(mask_ref[...] == 0, _MASK_NEG, scores)

    # Numerically stable softmax in f32 on the VPU.
    m = jnp.max(scores, axis=-1, keepdims=True)
    p = jnp.exp(scores - m)
    denom = jnp.sum(p, axis=-1, keepdims=True)
    attn = p * pl.reciprocal(denom)     # 1 reciprocal/row + muls, not S divides

    # TODO(synk): training-mode nn.Dropout on the attention weights is not
    # implemented (identity == eval mode).

    if w_ref is not None:
        w_ref[...] = attn.astype(w_ref.dtype)
    # Second matmul in the inputs' dtype on the MXU with f32 accumulation.
    o_ref[...] = jnp.dot(attn.astype(v_ref.dtype), v_ref[...],
                         preferred_element_type=jnp.float32).astype(o_ref.dtype)


def _make_kernel(has_mask, write_weights, scale):
    def kernel(*refs):
        q_ref, k_ref, v_ref = refs[0], refs[1], refs[2]
        idx = 3
        mask_ref = None
        if has_mask:
            mask_ref = refs[idx]
            idx += 1
        o_ref = refs[idx]
        idx += 1
        w_ref = refs[idx] if write_weights else None
        _sdpa_body(q_ref, k_ref, v_ref, o_ref, w_ref, mask_ref, scale)
    return kernel


# ----------------------------------------------------------------------------
# Tiling / VMEM budgeting
# ----------------------------------------------------------------------------
def _round_up(x, m):
    return ((x + m - 1) // m) * m


def _block_vmem_bytes(tq, S, D, in_itemsize, w_itemsize, has_mask, write_w):
    """Approximate per-step resident VMEM (all pipelined blocks double-buffered)."""
    b = 0
    b += 2 * tq * D * in_itemsize            # q block
    b += 2 * 2 * S * D * in_itemsize         # k + v blocks (resident across q tiles)
    b += 2 * tq * D * in_itemsize            # o block
    if write_w:
        b += 2 * tq * S * w_itemsize         # attention-weights block
    if has_mask:
        b += 2 * tq * S                      # int8 mask block
    b += 2 * tq * S * 4                      # f32 scores / exp temporaries
    return b


def _pick_block_q(S, D, in_itemsize, w_itemsize, has_mask, write_w, block_q):
    """Largest q-tile that (a) respects the user cap, (b) fits the VMEM budget."""
    cap = 256 if block_q is None else block_q
    s_cap = _round_up(S, 8)                  # never need a tile bigger than S (rounded)
    for cand in (256, 128, 64, 32, 16, 8):
        if cand > cap:
            continue
        eff = min(cand, s_cap)
        if _block_vmem_bytes(eff, S, D, in_itemsize, w_itemsize,
                             has_mask, write_w) <= _VMEM_BUDGET:
            return min(cand, s_cap)
    return min(8, s_cap) if s_cap >= 8 else s_cap


# ----------------------------------------------------------------------------
# Public wrapper
# ----------------------------------------------------------------------------
def scaled_dot_product_attention(q, k, v, mask=None, *, block_q=None,
                                 return_weights=True):
    """Returns (output [B,H,S,D], attn_weights [B,H,S,S] in q.dtype).

    With return_weights=False the S^2 weights writeback is skipped entirely and
    the second return value is None.  Fully-masked rows produce uniform 1/S
    weights (PyTorch's masked_fill(-inf) would produce NaN).
    """
    B, H, S, D = q.shape
    in_itemsize = jnp.dtype(q.dtype).itemsize
    w_dtype = q.dtype
    w_itemsize = jnp.dtype(w_dtype).itemsize
    has_mask = mask is not None

    tq = _pick_block_q(S, D, in_itemsize, w_itemsize, has_mask, return_weights,
                       block_q)
    grid_q = pl.cdiv(S, tq)
    S_pad = grid_q * tq

    q_in = q
    if S_pad != S:
        q_in = jnp.pad(q, ((0, 0), (0, 0), (0, S_pad - S), (0, 0)))

    q_spec = pl.BlockSpec((None, None, tq, D), lambda b, h, i: (b, h, i, 0))
    # K/V index_maps constant along the q-tile axis -> tiles stay resident.
    kv_spec = pl.BlockSpec((None, None, S, D), lambda b, h, i: (b, h, 0, 0))
    o_spec = pl.BlockSpec((None, None, tq, D), lambda b, h, i: (b, h, i, 0))

    in_specs = [q_spec, kv_spec, kv_spec]
    inputs = [q_in, k, v]

    if has_mask:
        # Keep the mask broadcastable (no [B,H,S,S] materialization), int8.
        m = (jnp.asarray(mask) != 0).astype(jnp.int8)
        while m.ndim < 4:
            m = m[None]
        MB, MH, MQ, MK = m.shape
        if MK != S or MB not in (1, B) or MH not in (1, H) or MQ not in (1, S):
            raise ValueError(
                f"mask shape {m.shape} is not broadcastable to {(B, H, S, S)}")
        if MQ == S and S_pad != S:
            m = jnp.pad(m, ((0, 0), (0, 0), (0, S_pad - S), (0, 0)),
                        constant_values=1)
        mq_block = tq if MQ != 1 else 1
        bsel, hsel, qsel = (MB == B), (MH == H), (MQ != 1)
        mask_spec = pl.BlockSpec(
            (None, None, mq_block, S),
            lambda b, h, i: (b if bsel else 0, h if hsel else 0,
                             i if qsel else 0, 0))
        in_specs.append(mask_spec)
        inputs.append(m)

    if return_weights:
        out_shape = (jax.ShapeDtypeStruct((B, H, S_pad, D), q.dtype),
                     jax.ShapeDtypeStruct((B, H, S_pad, S), w_dtype))
        out_specs = [o_spec,
                     pl.BlockSpec((None, None, tq, S),
                                  lambda b, h, i: (b, h, i, 0))]
    else:
        out_shape = jax.ShapeDtypeStruct((B, H, S_pad, D), q.dtype)
        out_specs = o_spec

    scale = 1.0 / math.sqrt(float(D))
    kernel = _make_kernel(has_mask, return_weights, scale)

    mask_bytes = int(inputs[3].size) if has_mask else 0
    cost = pl.CostEstimate(
        flops=4 * B * H * S_pad * S * D,                  # QK^T + attn@V
        transcendentals=B * H * S_pad * S,                # exp
        bytes_accessed=(3 * B * H * S * D * in_itemsize   # q, k, v reads
                        + B * H * S_pad * D * in_itemsize # output write
                        + (B * H * S_pad * S * w_itemsize if return_weights else 0)
                        + mask_bytes))

    needed = _block_vmem_bytes(tq, S, D, in_itemsize, w_itemsize, has_mask,
                               return_weights)
    vmem_limit = int(min(max(needed * 3 // 2, 16 * 1024 * 1024),
                         64 * 1024 * 1024))

    result = pl.pallas_call(
        kernel,
        out_shape=out_shape,
        grid_spec=pltpu.PrefetchScalarGridSpec(
            num_scalar_prefetch=0,
            grid=(B, H, grid_q),
            in_specs=in_specs,
            out_specs=out_specs,
        ),
        compiler_params=pltpu.CompilerParams(
            dimension_semantics=("parallel", "parallel", "parallel"),
            vmem_limit_bytes=vmem_limit),
        cost_estimate=cost,
    )(*inputs)

    if return_weights:
        out, attn_w = result
    else:
        out, attn_w = result, None

    if S_pad != S:
        out = out[:, :, :S, :]
        if attn_w is not None:
            attn_w = attn_w[:, :, :S, :]
    return out, attn_w


# ----------------------------------------------------------------------------
# Pure-JAX reference + self-test
# ----------------------------------------------------------------------------
def _reference(q, k, v, mask=None):
    D = q.shape[-1]
    scores = jnp.einsum("bhqd,bhkd->bhqk", q.astype(jnp.float32),
                        k.astype(jnp.float32)) / jnp.sqrt(jnp.float32(D))
    if mask is not None:
        scores = jnp.where(jnp.asarray(mask) == 0, -jnp.inf, scores)
    attn = jax.nn.softmax(scores, axis=-1)
    out = jnp.einsum("bhqk,bhkd->bhqd", attn, v.astype(jnp.float32))
    return out.astype(q.dtype), attn.astype(q.dtype)


if __name__ == "__main__":
    B, H, S, D = 2, 4, 16, 32

    key = jax.random.PRNGKey(0)
    kq, kk, kv, kq2, kk2, kv2 = jax.random.split(key, 6)
    q = jax.random.normal(kq, (B, H, S, D), dtype=jnp.float32)
    k = jax.random.normal(kk, (B, H, S, D), dtype=jnp.float32)
    v = jax.random.normal(kv, (B, H, S, D), dtype=jnp.float32)

    # 1) No-mask path (block_q=8 so the q-tile grid axis is exercised).
    out, attn_w = scaled_dot_product_attention(q, k, v, block_q=8)
    out = jax.block_until_ready(out)
    attn_w = jax.block_until_ready(attn_w)
    ref_out, ref_attn = _reference(q, k, v)
    assert out.shape == (B, H, S, D) and attn_w.shape == (B, H, S, S)
    assert jnp.allclose(out, ref_out, atol=1e-5, rtol=1e-5)
    assert jnp.allclose(attn_w, ref_attn, atol=1e-5, rtol=1e-5)

    # 2) Masked path: causal mask kept broadcastable as [1, 1, S, S].
    causal = (jnp.arange(S)[:, None] >= jnp.arange(S)[None, :]).astype(jnp.int32)
    mask = causal[None, None]                       # [1, 1, S, S]
    out_m, attn_m = scaled_dot_product_attention(q, k, v, mask, block_q=8)
    out_m = jax.block_until_ready(out_m)
    attn_m = jax.block_until_ready(attn_m)
    ref_out_m, ref_attn_m = _reference(q, k, v, mask)
    assert jnp.allclose(out_m, ref_out_m, atol=1e-5, rtol=1e-5)
    assert jnp.allclose(attn_m, ref_attn_m, atol=1e-5, rtol=1e-5)

    # 3) Ragged seq (padding path) + key-padding mask [B, 1, 1, S2].
    S2, valid = 12, 9
    q2 = jax.random.normal(kq2, (B, H, S2, D), dtype=jnp.float32)
    k2 = jax.random.normal(kk2, (B, H, S2, D), dtype=jnp.float32)
    v2 = jax.random.normal(kv2, (B, H, S2, D), dtype=jnp.float32)
    kpm = jnp.broadcast_to((jnp.arange(S2) < valid)[None, None, None, :],
                           (B, 1, 1, S2)).astype(jnp.int32)
    out2, attn2 = scaled_dot_product_attention(q2, k2, v2, kpm, block_q=8)
    out2 = jax.block_until_ready(out2)
    attn2 = jax.block_until_ready(attn2)
    ref_out2, ref_attn2 = _reference(q2, k2, v2, kpm)
    assert out2.shape == (B, H, S2, D) and attn2.shape == (B, H, S2, S2)
    assert jnp.allclose(out2, ref_out2, atol=1e-5, rtol=1e-5)
    assert jnp.allclose(attn2, ref_attn2, atol=1e-5, rtol=1e-5)

    # 4) Output-only path (no S^2 weights writeback).
    out_nw, w_none = scaled_dot_product_attention(q, k, v, block_q=8,
                                                  return_weights=False)
    out_nw = jax.block_until_ready(out_nw)
    assert w_none is None
    assert jnp.allclose(out_nw, ref_out, atol=1e-5, rtol=1e-5)

    print("KERNEL_OK")
</pallas_src>

<mosaic_0001>
module attributes {stable_mosaic.version = 11 : i64} {
  func.func @kernel(%arg0: i32, %arg1: i32, %arg2: i32, %arg3: memref<1x1x8x32xf32, #tpu.memory_space<vmem>>, %arg4: memref<1x1x16x32xf32, #tpu.memory_space<vmem>>, %arg5: memref<1x1x16x32xf32, #tpu.memory_space<vmem>>, %arg6: memref<1x1x8x32xf32, #tpu.memory_space<vmem>>, %arg7: memref<1x1x8x16xf32, #tpu.memory_space<vmem>>) attributes {dimension_semantics = [#tpu.dimension_semantics<parallel>, #tpu.dimension_semantics<parallel>, #tpu.dimension_semantics<parallel>], iteration_bounds = array<i64: 2, 4, 2>, scalar_prefetch = 0 : i64, scratch_operands = 0 : i64, tpu.core_type = #tpu.core_type<tc>, window_params = [{transform_indices = @transform_0, window_bounds = array<i64: 1, 1, 8, 32>}, {transform_indices = @transform_1, window_bounds = array<i64: 1, 1, 16, 32>}, {transform_indices = @transform_2, window_bounds = array<i64: 1, 1, 16, 32>}, {transform_indices = @transform_3, window_bounds = array<i64: 1, 1, 8, 32>}, {transform_indices = @transform_4, window_bounds = array<i64: 1, 1, 8, 16>}]} {
    %c0 = arith.constant 0 : index
    %c0_0 = arith.constant 0 : index
    %c0_1 = arith.constant 0 : index
    %c0_2 = arith.constant 0 : index
    %0 = vector.load %arg3[%c0, %c0_0, %c0_1, %c0_2] : memref<1x1x8x32xf32, #tpu.memory_space<vmem>>, vector<1x1x8x32xf32>
    %1 = vector.shape_cast %0 : vector<1x1x8x32xf32> to vector<8x32xf32>
    %c0_3 = arith.constant 0 : index
    %c0_4 = arith.constant 0 : index
    %c0_5 = arith.constant 0 : index
    %c0_6 = arith.constant 0 : index
    %2 = vector.load %arg4[%c0_3, %c0_4, %c0_5, %c0_6] : memref<1x1x16x32xf32, #tpu.memory_space<vmem>>, vector<1x1x16x32xf32>
    %3 = vector.shape_cast %2 : vector<1x1x16x32xf32> to vector<16x32xf32>
    %cst = arith.constant dense<0.000000e+00> : vector<8x16xf32>
    %4 = tpu.matmul %1, %3, %cst {dimension_numbers = #tpu.dot_dimension_numbers<[1], [1], [0], [0], [0, 0, 1, 0], [], []>} : vector<8x32xf32>, vector<16x32xf32>, vector<8x16xf32> -> vector<8x16xf32>
    %cst_7 = arith.constant 0.176776692 : f32
    %5 = vector.broadcast %cst_7 : f32 to vector<8x16xf32>
    %6 = arith.mulf %4, %5 : vector<8x16xf32>
    %cst_8 = arith.constant dense<0xFF800000> : vector<8xf32>
    %7 = vector.multi_reduction <maximumf>, %6, %cst_8 [1] : vector<8x16xf32> to vector<8xf32>
    %8 = vector.shape_cast %7 : vector<8xf32> to vector<8x1xf32>
    %9 = vector.broadcast %8 : vector<8x1xf32> to vector<8x16xf32>
    %10 = arith.subf %6, %9 : vector<8x16xf32>
    %11 = math.exp %10 : vector<8x16xf32>
    %cst_9 = arith.constant dense<0.000000e+00> : vector<8xf32>
    %12 = vector.multi_reduction <add>, %11, %cst_9 [1] : vector<8x16xf32> to vector<8xf32>
    %13 = vector.shape_cast %12 : vector<8xf32> to vector<8x1xf32>
    %14 = tpu.reciprocal %13 : vector<8x1xf32> -> vector<8x1xf32>
    %15 = vector.broadcast %14 : vector<8x1xf32> to vector<8x16xf32>
    %16 = arith.mulf %11, %15 : vector<8x16xf32>
    %c0_10 = arith.constant 0 : index
    %c0_11 = arith.constant 0 : index
    %c0_12 = arith.constant 0 : index
    %c0_13 = arith.constant 0 : index
    %17 = vector.load %arg7[%c0_10, %c0_11, %c0_12, %c0_13] : memref<1x1x8x16xf32, #tpu.memory_space<vmem>>, vector<1x1x8x16xf32>
    %18 = vector.shape_cast %17 : vector<1x1x8x16xf32> to vector<8x16xf32>
    %19 = vector.shape_cast %16 : vector<8x16xf32> to vector<1x1x8x16xf32>
    tpu.vector_store %arg7[%c0_10, %c0_11, %c0_12, %c0_13], %19 {strides = array<i32>} : memref<1x1x8x16xf32, #tpu.memory_space<vmem>>, vector<1x1x8x16xf32>,
    %c0_14 = arith.constant 0 : index
    %c0_15 = arith.constant 0 : index
    %c0_16 = arith.constant 0 : index
    %c0_17 = arith.constant 0 : index
    %20 = vector.load %arg5[%c0_14, %c0_15, %c0_16, %c0_17] : memref<1x1x16x32xf32, #tpu.memory_space<vmem>>, vector<1x1x16x32xf32>
    %21 = vector.shape_cast %20 : vector<1x1x16x32xf32> to vector<16x32xf32>
    %cst_18 = arith.constant dense<0.000000e+00> : vector<8x32xf32>
    %22 = tpu.matmul %16, %21, %cst_18 {dimension_numbers = #tpu.dot_dimension_numbers<[1], [0], [0], [1], [0, 0, 1, 1], [], []>} : vector<8x16xf32>, vector<16x32xf32>, vector<8x32xf32> -> vector<8x32xf32>
    %c0_19 = arith.constant 0 : index
    %c0_20 = arith.constant 0 : index
    %c0_21 = arith.constant 0 : index
    %c0_22 = arith.constant 0 : index
    %23 = vector.load %arg6[%c0_19, %c0_20, %c0_21, %c0_22] : memref<1x1x8x32xf32, #tpu.memory_space<vmem>>, vector<1x1x8x32xf32>
    %24 = vector.shape_cast %23 : vector<1x1x8x32xf32> to vector<8x32xf32>
    %25 = vector.shape_cast %22 : vector<8x32xf32> to vector<1x1x8x32xf32>
    tpu.vector_store %arg6[%c0_19, %c0_20, %c0_21, %c0_22], %25 {strides = array<i32>} : memref<1x1x8x32xf32, #tpu.memory_space<vmem>>, vector<1x1x8x32xf32>,
    return
  }
  func.func @transform_0(%arg0: i32, %arg1: i32, %arg2: i32) -> (i32, i32, i32, i32) {
    %c0_i32 = arith.constant 0 : i32
    %c0_i32_0 = arith.constant 0 : i32
    return %arg0, %arg1, %arg2, %c0_i32 : i32, i32, i32, i32
  }
  func.func @transform_1(%arg0: i32, %arg1: i32, %arg2: i32) -> (i32, i32, i32, i32) {
    %c0_i32 = arith.constant 0 : i32
    %c0_i32_0 = arith.constant 0 : i32
    %c0_i32_1 = arith.constant 0 : i32
    return %arg0, %arg1, %c0_i32, %c0_i32_0 : i32, i32, i32, i32
  }
  func.func @transform_2(%arg0: i32, %arg1: i32, %arg2: i32) -> (i32, i32, i32, i32) {
    %c0_i32 = arith.constant 0 : i32
    %c0_i32_0 = arith.constant 0 : i32
    %c0_i32_1 = arith.constant 0 : i32
    return %arg0, %arg1, %c0_i32, %c0_i32_0 : i32, i32, i32, i32
  }
  func.func @transform_3(%arg0: i32, %arg1: i32, %arg2: i32) -> (i32, i32, i32, i32) {
    %c0_i32 = arith.constant 0 : i32
    %c0_i32_0 = arith.constant 0 : i32
    return %arg0, %arg1, %arg2, %c0_i32 : i32, i32, i32, i32
  }
  func.func @transform_4(%arg0: i32, %arg1: i32, %arg2: i32) -> (i32, i32, i32, i32) {
    %c0_i32 = arith.constant 0 : i32
    %c0_i32_0 = arith.constant 0 : i32
    return %arg0, %arg1, %arg2, %c0_i32 : i32, i32, i32, i32
  }
}

</mosaic_0001>

<llo_original>
// kernel: tpu_custom_call.1
$region0: #{tpu_custom_call.1}
  #allocation0 [shape = 'u32[]', space=smem, size = 0x4, offset = 0x4, fixed_abs, tag = 'smem constant byte address 0x4 - core index']
  #allocation1 [shape = 'u32[144,128]{1,0:T(1,128)}', space=vmem, size = 0x12000, scoped, tag = 'internal scratch']
  %s0 = inlined_call_operand.hbm [shape: f32[2,4,16,32], index: 0, kind: input, shape index: {}]
  %s1 = inlined_call_operand.hbm [shape: f32[2,4,16,32], index: 1, kind: input, shape index: {}]
  %s2 = inlined_call_operand.hbm [shape: f32[2,4,16,32], index: 2, kind: input, shape index: {}]
  %s3 = inlined_call_operand.hbm [shape: f32[2,4,16,32], index: 3, kind: output, shape index: {0}]
  %s4 = inlined_call_operand.hbm [shape: f32[2,4,16,16], index: 4, kind: output, shape index: {1}]
  %5 = xla_tuple %s3, %s4
  %s6 = sld [smem:[#allocation0]]
  $region65: #{tpu_custom_call.1} parent=0
    _
  %s8 = ssub.s32 1, %s6
  %s9 = scalar_select 0, %s8, %s6
  $region1: #{tpu_custom_call.1} parent=0
    #allocation2 [shape = 'u8[8192]{0}', space=vmem, size = 0x2000, scoped, tag = 'input window, operand 0']
    #allocation3 [shape = 's32[2]{0}', space=sflag, size = 0x8, scoped, tag = 'scoped memory for tpu_custom_call.1']
    #allocation4 [shape = 's32[2]{0}', space=sflag, size = 0x8, scoped, tag = 'scoped memory for tpu_custom_call.1']
    #allocation5 [shape = 'u8[16384]{0}', space=vmem, size = 0x4000, scoped, tag = 'input window, operand 1']
    #allocation6 [shape = 's32[2]{0}', space=sflag, size = 0x8, scoped, tag = 'scoped memory for tpu_custom_call.1']
    #allocation7 [shape = 'u8[16384]{0}', space=vmem, size = 0x4000, scoped, tag = 'input window, operand 2']
    #allocation8 [shape = 'u8[8192]{0}', space=vmem, size = 0x2000, scoped, tag = 'output window, operand 0']
    #allocation9 [shape = 'u8[8192]{0}', space=vmem, size = 0x2000, scoped, tag = 'output window, operand 1']
    #allocation10 [shape = 's32[2]{0}', space=sflag, size = 0x8, scoped, tag = 'scoped memory for tpu_custom_call.1']
    %10 = vsyncpa [#allocation3], 0
    %s11 = scalar_lea.sflag [#allocation3], 1
    %12 = vsyncpa %s11, 0
    %13 = vsyncpa [#allocation6], 0
    %s14 = scalar_lea.sflag [#allocation6], 1
    %15 = vsyncpa %s14, 0
    %16 = vsyncpa [#allocation4], 0
    %s17 = scalar_lea.sflag [#allocation4], 1
    %18 = vsyncpa %s17, 0
    %19 = vsyncpa [#allocation10], 0
    %s20 = scalar_lea.sflag [#allocation10], 1
    %21 = vsyncpa %s20, 0
    loop: start=0, step=1, limit=18
    $region2: #{tpu_custom_call.1} parent=1 // loop_pre_header
      _
    $region3: #{tpu_custom_call.1} parent=1 // loop_header
      %s23 = sphi 0, %s27
      %p24 = scmp.ge.s32.totalorder %s23, 18
      %s30 = sphi 0, %s49
      %s31 = sphi 0, %s45
      %s32 = sphi 0, %s41
      %s33 = sphi 0, %s30
      %s34 = sphi 0, %s31
      %s35 = sphi 0, %s32
      %s36 = sphi 0, %s33
      %s37 = sphi 0, %s34
      %s38 = sphi 0, %s35
      %s56 = sphi 0, %s58
      %s59 = sphi 0, %s56
      %s60 = sphi 0, %s59
      %s76 = sphi 0, %s60
      %s84 = sphi 0, %s86
      %s87 = sphi 0, %s84
      %s88 = sphi 0, %s87
      %s104 = sphi 0, %s88
      %s112 = sphi 0, %s114
      %s115 = sphi 0, %s112
      %s116 = sphi 0, %s115
      %s132 = sphi 0, %s116
      %s142 = sphi 0, %s144
      %s145 = sphi 0, %s142
      %s146 = sphi 0, %s145
      %s162 = sphi 0, %s146
      %s172 = sphi 0, %s174
      %s175 = sphi 0, %s172
      %s176 = sphi 0, %s175
      %s192 = sphi 0, %s176
    $region4: #{tpu_custom_call.1} parent=1 // loop_header_branch
      %26 = sbr.rel (%p24) target = $region8
    $region5: #{tpu_custom_call.1} parent=1 // loop_body
      %s28 = ssub.s32 %s23, 1
      %s29 = ssub.s32 %s23, 2
      %s39 = sadd.s32 1, %s32
      %p40 = scmp.ge.s32.totalorder %s39, 2
      %s41 = scalar_select %p40, 0, %s39
      %s42 = sadd.s32 1, %s31
      %s43 = scalar_select %p40, %s42, %s31
      %p44 = scmp.ge.s32.totalorder %s43, 4
      %s45 = scalar_select %p44, 0, %s43
      %s46 = sadd.s32 1, %s30
      %s47 = scalar_select %p44, %s46, %s30
      %p48 = scmp.ge.s32.totalorder %s47, 2
      %s49 = scalar_select %p48, 0, %s47
      %s50 = ssub.s32 %s30, %s49
      %s51 = ssub.s32 %s31, %s45
      %s52 = sor.u32 %s50, %s51
      %s53 = ssub.s32 %s32, %s41
      %s54 = sor.u32 %s52, %s53
      %p55 = scmp.eq.s32.totalorder %s54, 0
      %s57 = sadd.s32 %s56, 1
      %s58 = scalar_select %p55, %s56, %s57
      %p61 = pneg %p55
      %p62 = scmp.eq.s32.totalorder %s23, 15
      %p63 = por %p61, %p62
      %p64 = scmp.ne.s32.totalorder %s56, %s59
      %p65 = scmp.eq.s32.totalorder %s23, 0
      %p66 = por %p64, %p65
      %p67 = scmp.ne.s32.totalorder %s56, %s59
      %p68 = scmp.eq.s32.totalorder %s28, 15
      %p69 = por %p67, %p68
      %p70 = scmp.ne.s32.totalorder %s59, %s60
      %p71 = scmp.eq.s32.totalorder %s28, 0
      %p72 = por %p70, %p71
      %p73 = scmp.ne.s32.totalorder %s59, %s60
      %p74 = scmp.eq.s32.totalorder %s29, 15
      %p75 = por %p73, %p74
      %p77 = scmp.ne.s32.totalorder %s60, %s76
      %p78 = scmp.eq.s32.totalorder %s29, 0
      %p79 = por %p77, %p78
      %s80 = ssub.s32 %s30, %s49
      %s81 = ssub.s32 %s31, %s45
      %s82 = sor.u32 %s80, %s81
      %p83 = scmp.eq.s32.totalorder %s82, 0
      %s85 = sadd.s32 %s84, 1
      %s86 = scalar_select %p83, %s84, %s85
      %p89 = pneg %p83
      %p90 = scmp.eq.s32.totalorder %s23, 15
      %p91 = por %p89, %p90
      %p92 = scmp.ne.s32.totalorder %s84, %s87
      %p93 = scmp.eq.s32.totalorder %s23, 0
      %p94 = por %p92, %p93
      %p95 = scmp.ne.s32.totalorder %s84, %s87
      %p96 = scmp.eq.s32.totalorder %s28, 15
      %p97 = por %p95, %p96
      %p98 = scmp.ne.s32.totalorder %s87, %s88
      %p99 = scmp.eq.s32.totalorder %s28, 0
      %p100 = por %p98, %p99
      %p101 = scmp.ne.s32.totalorder %s87, %s88
      %p102 = scmp.eq.s32.totalorder %s29, 15
      %p103 = por %p101, %p102
      %p105 = scmp.ne.s32.totalorder %s88, %s104
      %p106 = scmp.eq.s32.totalorder %s29, 0
      %p107 = por %p105, %p106
      %s108 = ssub.s32 %s30, %s49
      %s109 = ssub.s32 %s31, %s45
      %s110 = sor.u32 %s108, %s109
      %p111 = scmp.eq.s32.totalorder %s110, 0
      %s113 = sadd.s32 %s112, 1
      %s114 = scalar_select %p111, %s112, %s113
      %p117 = pneg %p111
      %p118 = scmp.eq.s32.totalorder %s23, 15
      %p119 = por %p117, %p118
      %p120 = scmp.ne.s32.totalorder %s112, %s115
      %p121 = scmp.eq.s32.totalorder %s23, 0
      %p122 = por %p120, %p121
      %p123 = scmp.ne.s32.totalorder %s112, %s115
      %p124 = scmp.eq.s32.totalorder %s28, 15
      %p125 = por %p123, %p124
      %p126 = scmp.ne.s32.totalorder %s115, %s116
      %p127 = scmp.eq.s32.totalorder %s28, 0
      %p128 = por %p126, %p127
      %p129 = scmp.ne.s32.totalorder %s115, %s116
      %p130 = scmp.eq.s32.totalorder %s29, 15
      %p131 = por %p129, %p130
      %p133 = scmp.ne.s32.totalorder %s116, %s132
      %p134 = scmp.eq.s32.totalorder %s29, 0
      %p135 = por %p133, %p134
      %s136 = ssub.s32 %s30, %s49
      %s137 = ssub.s32 %s31, %s45
      %s138 = sor.u32 %s136, %s137
      %s139 = ssub.s32 %s32, %s41
      %s140 = sor.u32 %s138, %s139
      %p141 = scmp.eq.s32.totalorder %s140, 0
      %s143 = sadd.s32 %s142, 1
      %s144 = scalar_select %p141, %s142, %s143
      %p147 = pneg %p141
      %p148 = scmp.eq.s32.totalorder %s23, 15
      %p149 = por %p147, %p148
      %p150 = scmp.ne.s32.totalorder %s142, %s145
      %p151 = scmp.eq.s32.totalorder %s23, 0
      %p152 = por %p150, %p151
      %p153 = scmp.ne.s32.totalorder %s142, %s145
      %p154 = scmp.eq.s32.totalorder %s28, 15
      %p155 = por %p153, %p154
      %p156 = scmp.ne.s32.totalorder %s145, %s146
      %p157 = scmp.eq.s32.totalorder %s28, 0
      %p158 = por %p156, %p157
      %p159 = scmp.ne.s32.totalorder %s145, %s146
      %p160 = scmp.eq.s32.totalorder %s29, 15
      %p161 = por %p159, %p160
      %p163 = scmp.ne.s32.totalorder %s146, %s162
      %p164 = scmp.eq.s32.totalorder %s29, 0
      %p165 = por %p163, %p164
      %s166 = ssub.s32 %s30, %s49
      %s167 = ssub.s32 %s31, %s45
      %s168 = sor.u32 %s166, %s167
      %s169 = ssub.s32 %s32, %s41
      %s170 = sor.u32 %s168, %s169
      %p171 = scmp.eq.s32.totalorder %s170, 0
      %s173 = sadd.s32 %s172, 1
      %s174 = scalar_select %p171, %s172, %s173
      %p177 = pneg %p171
      %p178 = scmp.eq.s32.totalorder %s23, 15
      %p179 = por %p177, %p178
      %p180 = scmp.ne.s32.totalorder %s172, %s175
      %p181 = scmp.eq.s32.totalorder %s23, 0
      %p182 = por %p180, %p181
      %p183 = scmp.ne.s32.totalorder %s172, %s175
      %p184 = scmp.eq.s32.totalorder %s28, 15
      %p185 = por %p183, %p184
      %p186 = scmp.ne.s32.totalorder %s175, %s176
      %p187 = scmp.eq.s32.totalorder %s28, 0
      %p188 = por %p186, %p187
      %p189 = scmp.ne.s32.totalorder %s175, %s176
      %p190 = scmp.eq.s32.totalorder %s29, 15
      %p191 = por %p189, %p190
      %p193 = scmp.ne.s32.totalorder %s176, %s192
      %p194 = scmp.eq.s32.totalorder %s29, 0
      %p195 = por %p193, %p194
      %p196 = scmp.le.s32.totalorder 1, %s23
      %p197 = scmp.lt.s32.totalorder %s23, 17
      %p198 = pnand %p196, %p197
      %p199 = pneg %p198
      // Predicated region
      $region9: #{tpu_custom_call.1} parent=5 // pred_check
        _
      $region10: #{tpu_custom_call.1} parent=5 // pred_check_branch
        %201 = sbr.rel (%p198) target = $region12
      $region11: #{tpu_custom_call.1} parent=5 // pred_region
        %s202 = ssub.s32 %s23, 1
      $region12: #{tpu_custom_call.1} parent=5 // pred_fallthru
        _
      %p203 = scmp.lt.s32.totalorder %s23, 16
      // Predicated region
      $region13: #{tpu_custom_call.1} parent=5 // pred_check
        %p204 = pneg %p203
      $region14: #{tpu_custom_call.1} parent=5 // pred_check_branch
        %206 = sbr.rel (%p204) target = $region16
      $region15: #{tpu_custom_call.1} parent=5 // pred_region
        // Predicated region
        $region17: #{tpu_custom_call.1} parent=15 // pred_check
          %p207 = pneg %p66
        $region18: #{tpu_custom_call.1} parent=15 // pred_check_branch
          %209 = sbr.rel (%p207) target = $region20
        $region19: #{tpu_custom_call.1} parent=15 // pred_region
          %s210 = sand.u32 %s56, 1
          %s211 = scalar_lea.sflag [#allocation3], %s210
          %s212 = sand.u32 %s56, 1
          %s213 = smul.addr %s212, 8
          %s214 = scalar_lea.vmem [#allocation2], %s213
          %s216 = ssub.s32 128, 128
          %217 = vsyncadd %s211, %s216
          %s218 = smul.addr %s31, 2
          %s219 = sadd.s32 %s32, %s218
          %s220 = smul.addr %s30, 8
          %s221 = sadd.s32 %s219, %s220
          %s222 = smul.addr %s221, 128
          %s223 = scalar_lea.hbm %s0, %s222
          %s225 = sshll.u32 %s214, 4
          %s226 = int_to_ptr.vmem [resolvable:$true] %s225
          %228 = dma.hbm_to_vmem [thread:$0]  %s223, 128, %s226, %s211
        $region20: #{tpu_custom_call.1} parent=15 // pred_fallthru
          _
        // Predicated region
        $region21: #{tpu_custom_call.1} parent=15 // pred_check
          %p229 = pneg %p94
        $region22: #{tpu_custom_call.1} parent=15 // pred_check_branch
          %231 = sbr.rel (%p229) target = $region24
        $region23: #{tpu_custom_call.1} parent=15 // pred_region
          %s232 = sand.u32 %s23, 1
          %s233 = scalar_lea.sflag [#allocation6], %s232
          %s234 = sand.u32 %s84, 1
          %s235 = smul.addr %s234, 16
          %s236 = scalar_lea.vmem [#allocation5], %s235
          %s238 = ssub.s32 256, 256
          %239 = vsyncadd %s233, %s238
          %s240 = smul.addr %s31, 2
          %s241 = smul.addr %s30, 8
          %s242 = sadd.s32 %s240, %s241
          %s243 = smul.addr %s242, 128
          %s244 = scalar_lea.hbm %s1, %s243
          %s245 = sshll.u32 %s236, 4
          %s246 = int_to_ptr.vmem [resolvable:$true] %s245
          %251 = dma.hbm_to_vmem [thread:$0]  %s244, 256, %s246, %s233, 128, 128, 8
        $region24: #{tpu_custom_call.1} parent=15 // pred_fallthru
          _
        // Predicated region
        $region25: #{tpu_custom_call.1} parent=15 // pred_check
          %p252 = pneg %p122
        $region26: #{tpu_custom_call.1} parent=15 // pred_check_branch
          %254 = sbr.rel (%p252) target = $region28
        $region27: #{tpu_custom_call.1} parent=15 // pred_region
          %s255 = sand.u32 %s23, 1
          %s256 = scalar_lea.sflag [#allocation6], %s255
          %s257 = sand.u32 %s112, 1
          %s258 = smul.addr %s257, 16
          %s259 = scalar_lea.vmem [#allocation7], %s258
          %s261 = ssub.s32 256, 256
          %262 = vsyncadd %s256, %s261
          %s263 = smul.addr %s31, 2
          %s264 = smul.addr %s30, 8
          %s265 = sadd.s32 %s263, %s264
          %s266 = smul.addr %s265, 128
          %s267 = scalar_lea.hbm %s2, %s266
          %s268 = sshll.u32 %s259, 4
          %s269 = int_to_ptr.vmem [resolvable:$true] %s268
          %274 = dma.hbm_to_vmem [thread:$0]  %s267, 256, %s269, %s256, 128, 128, 8
        $region28: #{tpu_custom_call.1} parent=15 // pred_fallthru
          _
      $region16: #{tpu_custom_call.1} parent=5 // pred_fallthru
        _
      %p275 = scmp.le.s32.totalorder 1, %s23
      %p276 = scmp.lt.s32.totalorder %s23, 17
      %p277 = pnand %p275, %p276
      %p278 = pneg %p277
      // Predicated region
      $region29: #{tpu_custom_call.1} parent=5 // pred_check
        _
      $region30: #{tpu_custom_call.1} parent=5 // pred_check_branch
        %280 = sbr.rel (%p277) target = $region32
      $region31: #{tpu_custom_call.1} parent=5 // pred_region
        %s281 = ssub.s32 %s23, 1
        %s282 = sand.u32 %s59, 1
        %s283 = scalar_lea.sflag [#allocation3], %s282
        %s284 = sand.u32 %s59, 1
        %s285 = smul.addr %s284, 8
        %s286 = scalar_lea.vmem [#allocation2], %s285
        // Predicated region
        $region33: #{tpu_custom_call.1} parent=31 // pred_check
          %p287 = pneg %p72
        $region34: #{tpu_custom_call.1} parent=31 // pred_check_branch
          %289 = sbr.rel (%p287) target = $region36
        $region35: #{tpu_custom_call.1} parent=31 // pred_region
          %290 = dma.done %s283, 128
        $region36: #{tpu_custom_call.1} parent=31 // pred_fallthru
          _
        %s291 = sand.u32 %s28, 1
        %s292 = scalar_lea.sflag [#allocation6], %s291
        %s293 = sand.u32 %s87, 1
        %s294 = smul.addr %s293, 16
        %s295 = scalar_lea.vmem [#allocation5], %s294
        // Predicated region
        $region37: #{tpu_custom_call.1} parent=31 // pred_check
          %p296 = pneg %p100
        $region38: #{tpu_custom_call.1} parent=31 // pred_check_branch
          %298 = sbr.rel (%p296) target = $region40
        $region39: #{tpu_custom_call.1} parent=31 // pred_region
          %299 = dma.done %s292, 256
        $region40: #{tpu_custom_call.1} parent=31 // pred_fallthru
          _
        %s300 = sand.u32 %s28, 1
        %s301 = scalar_lea.sflag [#allocation6], %s300
        %s302 = sand.u32 %s115, 1
        %s303 = smul.addr %s302, 16
        %s304 = scalar_lea.vmem [#allocation7], %s303
        // Predicated region
        $region41: #{tpu_custom_call.1} parent=31 // pred_check
          %p305 = pneg %p128
        $region42: #{tpu_custom_call.1} parent=31 // pred_check_branch
          %307 = sbr.rel (%p305) target = $region44
        $region43: #{tpu_custom_call.1} parent=31 // pred_region
          %308 = dma.done %s301, 256
        $region44: #{tpu_custom_call.1} parent=31 // pred_fallthru
          _
        %s309 = sand.u32 %s59, 1
        %s310 = scalar_lea.sflag [#allocation3], %s309
        %s311 = sand.u32 %s59, 1
        %s312 = smul.addr %s311, 8
        %s313 = scalar_lea.vmem [#allocation2], %s312
        %p314 = pneg %p72
        %p315 = pneg %p69
        %s316 = sand.u32 %s28, 1
        %s317 = scalar_lea.sflag [#allocation6], %s316
        %s318 = sand.u32 %s87, 1
        %s319 = smul.addr %s318, 16
        %s320 = scalar_lea.vmem [#allocation5], %s319
        %p321 = pneg %p100
        %p322 = pneg %p97
        %s323 = sand.u32 %s28, 1
        %s324 = scalar_lea.sflag [#allocation6], %s323
        %s325 = sand.u32 %s115, 1
        %s326 = smul.addr %s325, 16
        %s327 = scalar_lea.vmem [#allocation7], %s326
        %p328 = pneg %p128
        %p329 = pneg %p125
        %p330 = pneg %p158
        %p331 = pneg %p155
        %s332 = sand.u32 %s145, 1
        %s333 = scalar_lea.sflag [#allocation4], %s332
        %s334 = sand.u32 %s145, 1
        %s335 = smul.addr %s334, 8
        %s336 = scalar_lea.vmem [#allocation8], %s335
        %p337 = pneg %p188
        %p338 = pneg %p185
        %s339 = sand.u32 %s175, 1
        %s340 = scalar_lea.sflag [#allocation10], %s339
        %s341 = sand.u32 %s175, 1
        %s342 = smul.addr %s341, 8
        %s343 = scalar_lea.vmem [#allocation9], %s342
        %v344 = vld [vmem:[%s286] sm:$0xff]
        %v345 = vld [vmem:[%s295] sm:$0xff]
        %v346 = vld [vmem:[%s295 + $0x8] sm:$0xff]
        %vm347 = vcmask 261120
        %v349 = vsel %vm347, %v344, 0
        %v352 = vsel %vm347, %v345, 0
        %v355 = vsel %vm347, %v346, 0
        %357 = vmatprep.subr.mxu0 0.0
        %358 = vmatpush1.xpose.msra.mxu0 %v352
        %359 = vmatprep.subr.mxu0 0.0
        %360 = vmatpush1.xpose.msra.mxu0 %v355
        %361 = vmatprep.subr.mxu0 0.0
        %362 = vmatpush1.xpose.msra.mxu0 0.0
        %363 = vmatprep.subr.mxu0 0.0
        %364 = vmatpush1.xpose.msra.mxu0 0.0
        %365 = vmatprep.subr.mxu0 0.0
        %366 = vmatpush1.xpose.msra.mxu0 0.0
        %367 = vmatprep.subr.mxu0 0.0
        %368 = vmatpush1.xpose.msra.mxu0 0.0
        %369 = vmatprep.subr.mxu0 0.0
        %370 = vmatpush1.xpose.msra.mxu0 0.0
        %371 = vmatprep.subr.mxu0 0.0
        %372 = vmatpush1.xpose.msra.mxu0 0.0
        %373 = vmatprep.subr.mxu0 0.0
        %374 = vmatpush1.xpose.msra.mxu0 0.0
        %375 = vmatprep.subr.mxu0 0.0
        %376 = vmatpush1.xpose.msra.mxu0 0.0
        %377 = vmatprep.subr.mxu0 0.0
        %378 = vmatpush1.xpose.msra.mxu0 0.0
        %379 = vmatprep.subr.mxu0 0.0
        %380 = vmatpush1.xpose.msra.mxu0 0.0
        %381 = vmatprep.subr.mxu0 0.0
        %382 = vmatpush1.xpose.msra.mxu0 0.0
        %383 = vmatprep.subr.mxu0 0.0
        %384 = vmatpush1.xpose.msra.mxu0 0.0
        %385 = vmatprep.subr.mxu0 0.0
        %386 = vmatpush1.xpose.msra.mxu0 0.0
        %387 = vmatprep.subr.mxu0 0.0
        %388 = vmatpush1.xpose.msra.mxu0 0.0
        %389 = vmatprep.subr.mxu0 0.0
        %390 = vmatpush1.xpose.msra.mxu0 0.0
        %391 = vmatprep.subr.mxu0 0.0
        %392 = vmatpush1.xpose.msra.mxu0 0.0
        %393 = vmatprep.subr.mxu0 0.0
        %394 = vmatpush1.xpose.msra.mxu0 0.0
        %395 = vmatprep.subr.mxu0 0.0
        %396 = vmatpush1.xpose.msra.mxu0 0.0
        %397 = vmatprep.subr.mxu0 0.0
        %398 = vmatpush1.xpose.msra.mxu0 0.0
        %399 = vmatprep.subr.mxu0 0.0
        %400 = vmatpush1.xpose.msra.mxu0 0.0
        %401 = vmatprep.subr.mxu0 0.0
        %402 = vmatpush1.xpose.msra.mxu0 0.0
        %403 = vmatprep.subr.mxu0 0.0
        %404 = vmatpush1.xpose.msra.mxu0 0.0
        %405 = vmatprep.subr.mxu0 0.0
        %406 = vmatpush1.xpose.msra.mxu0 0.0
        %407 = vmatprep.subr.mxu0 0.0
        %408 = vmatpush1.xpose.msra.mxu0 0.0
        %409 = vmatprep.subr.mxu0 0.0
        %410 = vmatpush1.xpose.msra.mxu0 0.0
        %411 = vmatprep.subr.mxu0 0.0
        %412 = vmatpush1.xpose.msra.mxu0 0.0
        %413 = vmatprep.subr.mxu0 0.0
        %414 = vmatpush1.xpose.msra.mxu0 0.0
        %415 = vmatprep.subr.mxu0 0.0
        %416 = vmatpush1.xpose.msra.mxu0 0.0
        %417 = vmatprep.subr.mxu0 0.0
        %418 = vmatpush1.xpose.msra.mxu0 0.0
        %419 = vmatprep.subr.mxu0 0.0
        %420 = vmatpush1.xpose.msra.mxu0 0.0
        %421 = vmatprep.mubr.f32.mxu0 0.0
        %422 = vmatmul.mubr.f32.gmra.mrb[0].mxu0 %v349
        %v423 = vpop.f32.mrb[0].mxu0
        %v424 = vadd.f32 0.0, %v423
        %v425 = vpop.f32.mrb[0].mxu0
        %426 = vdwg.mxu0
        %v427 = vmul.f32 %v424, 0.17677669
        %vm428 = vcmask 130048
        %v429 = vsel %vm428, %v427, -inf
        %430 = vmax.xlane.f32.xlu0 %v429
        %v431 = vpop.xlane.xlu0 %430
        %v432 = vsub.f32 %v427, %v431
        %v433 = vmul.f32 %v432, 1.442695
        %v434 = vpow.pop %v433
        %v435 = vsel %vm428, %v434, 0.0
        %436 = vadd.xlane.f32.xlu0 %v435
        %v437 = vpop.xlane.xlu0 %436
        %v438 = vrcp.pop %v437
        %v439 = vmul.f32 %v434, %v438
        %440 = vst.msk [vmem:[%s343] sm:$0xff] %vm428, %v439
        %v441 = vld [vmem:[%s304] sm:$0xff]
        %v442 = vld [vmem:[%s304 + $0x8] sm:$0xff]
        %v444 = vsel %vm428, %v439, 0
        %446 = vmatprep.subr.mxu0 0.0
        %447 = vmatpush1.msra.mxu0 %v441
        %448 = vmatprep.subr.mxu0 0.0
        %449 = vmatpush1.msra.mxu0 %v442
        %450 = vmatprep.subr.mxu0 0.0
        %451 = vmatpush1.msra.mxu0 0.0
        %452 = vmatprep.subr.mxu0 0.0
        %453 = vmatpush1.msra.mxu0 0.0
        %454 = vmatprep.subr.mxu0 0.0
        %455 = vmatpush1.msra.mxu0 0.0
        %456 = vmatprep.subr.mxu0 0.0
        %457 = vmatpush1.msra.mxu0 0.0
        %458 = vmatprep.subr.mxu0 0.0
        %459 = vmatpush1.msra.mxu0 0.0
        %460 = vmatprep.subr.mxu0 0.0
        %461 = vmatpush1.msra.mxu0 0.0
        %462 = vmatprep.subr.mxu0 0.0
        %463 = vmatpush1.msra.mxu0 0.0
        %464 = vmatprep.subr.mxu0 0.0
        %465 = vmatpush1.msra.mxu0 0.0
        %466 = vmatprep.subr.mxu0 0.0
        %467 = vmatpush1.msra.mxu0 0.0
        %468 = vmatprep.subr.mxu0 0.0
        %469 = vmatpush1.msra.mxu0 0.0
        %470 = vmatprep.subr.mxu0 0.0
        %471 = vmatpush1.msra.mxu0 0.0
        %472 = vmatprep.subr.mxu0 0.0
        %473 = vmatpush1.msra.mxu0 0.0
        %474 = vmatprep.subr.mxu0 0.0
        %475 = vmatpush1.msra.mxu0 0.0
        %476 = vmatprep.subr.mxu0 0.0
        %477 = vmatpush1.msra.mxu0 0.0
        %478 = vmatprep.subr.mxu0 0.0
        %479 = vmatpush1.msra.mxu0 0.0
        %480 = vmatprep.subr.mxu0 0.0
        %481 = vmatpush1.msra.mxu0 0.0
        %482 = vmatprep.subr.mxu0 0.0
        %483 = vmatpush1.msra.mxu0 0.0
        %484 = vmatprep.subr.mxu0 0.0
        %485 = vmatpush1.msra.mxu0 0.0
        %486 = vmatprep.subr.mxu0 0.0
        %487 = vmatpush1.msra.mxu0 0.0
        %488 = vmatprep.subr.mxu0 0.0
        %489 = vmatpush1.msra.mxu0 0.0
        %490 = vmatprep.subr.mxu0 0.0
        %491 = vmatpush1.msra.mxu0 0.0
        %492 = vmatprep.subr.mxu0 0.0
        %493 = vmatpush1.msra.mxu0 0.0
        %494 = vmatprep.subr.mxu0 0.0
        %495 = vmatpush1.msra.mxu0 0.0
        %496 = vmatprep.subr.mxu0 0.0
        %497 = vmatpush1.msra.mxu0 0.0
        %498 = vmatprep.subr.mxu0 0.0
        %499 = vmatpush1.msra.mxu0 0.0
        %500 = vmatprep.subr.mxu0 0.0
        %501 = vmatpush1.msra.mxu0 0.0
        %502 = vmatprep.subr.mxu0 0.0
        %503 = vmatpush1.msra.mxu0 0.0
        %504 = vmatprep.subr.mxu0 0.0
        %505 = vmatpush1.msra.mxu0 0.0
        %506 = vmatprep.subr.mxu0 0.0
        %507 = vmatpush1.msra.mxu0 0.0
        %508 = vmatprep.subr.mxu0 0.0
        %509 = vmatpush1.msra.mxu0 0.0
        %510 = vmatprep.mubr.f32.mxu0 0.0
        %511 = vmatmul.mubr.f32.gmra.mrb[0].mxu0 %v444
        %v512 = vpop.f32.mrb[0].mxu0
        %v513 = vadd.f32 0.0, %v512
        %v514 = vpop.f32.mrb[0].mxu0
        %515 = vdwg.mxu0
        %516 = vst.msk [vmem:[%s336] sm:$0xff] %vm347, %v513
        %s517 = sand.u32 %s145, 1
        %s518 = scalar_lea.sflag [#allocation4], %s517
        %s519 = sand.u32 %s145, 1
        %s520 = smul.addr %s519, 8
        %s521 = scalar_lea.vmem [#allocation8], %s520
        %s522 = sand.u32 %s175, 1
        %s523 = scalar_lea.sflag [#allocation10], %s522
        %s524 = sand.u32 %s175, 1
        %s525 = smul.addr %s524, 8
        %s526 = scalar_lea.vmem [#allocation9], %s525
        // Predicated region
        $region45: #{tpu_custom_call.1} parent=31 // pred_check
          %p527 = pneg %p155
        $region46: #{tpu_custom_call.1} parent=31 // pred_check_branch
          %529 = sbr.rel (%p527) target = $region48
        $region47: #{tpu_custom_call.1} parent=31 // pred_region
          %s531 = ssub.s32 128, 128
          %532 = vsyncadd %s518, %s531
          %s533 = smul.addr %s34, 2
          %s534 = sadd.s32 %s35, %s533
          %s535 = smul.addr %s33, 8
          %s536 = sadd.s32 %s534, %s535
          %s537 = smul.addr %s536, 128
          %s538 = scalar_lea.hbm %s3, %s537
          %s540 = sshll.u32 %s521, 4
          %s541 = int_to_ptr.vmem [resolvable:$true] %s540
          %543 = dma.vmem_to_hbm [thread:$0]  %s541, 128, %s538, %s518
        $region48: #{tpu_custom_call.1} parent=31 // pred_fallthru
          _
        // Predicated region
        $region49: #{tpu_custom_call.1} parent=31 // pred_check
          %p544 = pneg %p185
        $region50: #{tpu_custom_call.1} parent=31 // pred_check_branch
          %546 = sbr.rel (%p544) target = $region52
        $region51: #{tpu_custom_call.1} parent=31 // pred_region
          %s548 = ssub.s32 128, 128
          %549 = vsyncadd %s523, %s548
          %s550 = smul.addr %s34, 2
          %s551 = sadd.s32 %s35, %s550
          %s552 = smul.addr %s33, 8
          %s553 = sadd.s32 %s551, %s552
          %s554 = smul.addr %s553, 128
          %s555 = scalar_lea.hbm %s4, %s554
          %s557 = sshll.u32 %s526, 4
          %s558 = int_to_ptr.vmem [resolvable:$true] %s557
          %560 = dma.vmem_to_hbm [thread:$0]  %s558, 128, %s555, %s523
        $region52: #{tpu_custom_call.1} parent=31 // pred_fallthru
          _
      $region32: #{tpu_custom_call.1} parent=5 // pred_fallthru
        _
      %p561 = scmp.le.s32.totalorder 2, %s23
      // Predicated region
      $region53: #{tpu_custom_call.1} parent=5 // pred_check
        %p562 = pneg %p561
      $region54: #{tpu_custom_call.1} parent=5 // pred_check_branch
        %564 = sbr.rel (%p562) target = $region56
      $region55: #{tpu_custom_call.1} parent=5 // pred_region
        %s565 = ssub.s32 %s23, 2
        // Predicated region
        $region57: #{tpu_custom_call.1} parent=55 // pred_check
          %p566 = pneg %p161
        $region58: #{tpu_custom_call.1} parent=55 // pred_check_branch
          %568 = sbr.rel (%p566) target = $region60
        $region59: #{tpu_custom_call.1} parent=55 // pred_region
          %s569 = sand.u32 %s146, 1
          %s570 = scalar_lea.sflag [#allocation4], %s569
          %s571 = sand.u32 %s146, 1
          %s572 = smul.addr %s571, 8
          %s573 = scalar_lea.vmem [#allocation8], %s572
          %574 = dma.done %s570, 128
        $region60: #{tpu_custom_call.1} parent=55 // pred_fallthru
          _
        // Predicated region
        $region61: #{tpu_custom_call.1} parent=55 // pred_check
          %p575 = pneg %p191
        $region62: #{tpu_custom_call.1} parent=55 // pred_check_branch
          %577 = sbr.rel (%p575) target = $region64
        $region63: #{tpu_custom_call.1} parent=55 // pred_region
          %s578 = sand.u32 %s176, 1
          %s579 = scalar_lea.sflag [#allocation10], %s578
          %s580 = sand.u32 %s176, 1
          %s581 = smul.addr %s580, 8
          %s582 = scalar_lea.vmem [#allocation9], %s581
          %583 = dma.done %s579, 128
        $region64: #{tpu_custom_call.1} parent=55 // pred_fallthru
          _
      $region56: #{tpu_custom_call.1} parent=5 // pred_fallthru
        _
    $region6: #{tpu_custom_call.1} parent=1 // loop_footer
      %s27 = sadd.s32 1, %s23
    $region7: #{tpu_custom_call.1} parent=1 // loop_footer_branch
      %22 = sbr.rel target = $region3
    $region8: #{tpu_custom_call.1} parent=1 // loop_exit
      _
    %584 = vsyncpa [#allocation3], 1
    %s585 = scalar_lea.sflag [#allocation3], 1
    %586 = vsyncpa %s585, 1
    %587 = vsyncpa [#allocation6], 1
    %s588 = scalar_lea.sflag [#allocation6], 1
    %589 = vsyncpa %s588, 1
    %590 = vsyncpa [#allocation4], 1
    %s591 = scalar_lea.sflag [#allocation4], 1
    %592 = vsyncpa %s591, 1
    %593 = vsyncpa [#allocation10], 1
    %s594 = scalar_lea.sflag [#allocation10], 1
    %595 = vsyncpa %s594, 1

</llo_original>
